<compile_context>
chip_gen: v6e
topology: v6e:2x2x1
jax: 0.10.0
libtpu: 0.0.40
codegen_flags: <defaults>
</compile_context>

<pallas_src>
import jax
import jax.numpy as jnp
from jax import lax
from jax.experimental import pallas as pl
from jax.experimental.pallas import tpu as pltpu


def _round_up(x, m):
    return ((x + m - 1) // m) * m


def mlp_kernel(x_ref, w1_ref, b1_ref, w2_ref, b2_ref, w3_ref, b3_ref, o_ref):
    """One batch tile.

      x_ref  : (TILE_B, F)   input tile (f32 or bf16)
      w1_ref : (64, F)       PyTorch [out, in] layout (same dtype as x)
      b1_ref : (64, 1)       f32
      w2_ref : (32, 64)      f32
      b2_ref : (32, 1)       f32
      w3_ref : (32, 1)       f32, fc3 weight stored as a column
      b3_ref : (1, 1)        f32
      o_ref  : (1, TILE_B)   sigmoid outputs, batch on the lane axis
    """
    x = x_ref[...]                                            # (TILE_B, F)

    # fc1: (64, F) . (TILE_B, F)^T -> (64, TILE_B); f32 accumulation on the MXU.
    h1 = lax.dot_general(w1_ref[...], x, (((1,), (1,)), ((), ())),
                         preferred_element_type=jnp.float32)
    h1 = jnp.maximum(h1 + b1_ref[...], 0.0)                   # bias + ReLU in f32 (VPU)

    # fc2: (32, 64) @ (64, TILE_B) -> (32, TILE_B)
    h2 = jnp.dot(w2_ref[...], h1, preferred_element_type=jnp.float32)
    h2 = jnp.maximum(h2 + b2_ref[...], 0.0)

    # fc3 (N=1): skip the MXU; VPU multiply + sublane reduction -> (1, TILE_B)
    logits = jnp.sum(h2 * w3_ref[...], axis=0, keepdims=True) + b3_ref[...]

    o_ref[...] = jax.nn.sigmoid(logits).astype(o_ref.dtype)   # lane-dense store


def intrusion_detection_forward(x, params, *, block_batch=4096, min_tiles=1,
                                vmem_limit_bytes=None):
    """x: [B, input_size] (f32 or bf16) -> [B, 1] float32.

    block_batch: batch tile size (rounded up to a multiple of 128). Larger
        tiles amortize grid-step overhead; 4096 is safe on every generation's
        scoped-VMEM default. min_tiles=2 helps v7x (2 TensorCores) for
        mid-sized batches.
    """
    w1, b1, w2, b2, w3, b3 = params
    B, F = x.shape

    # fc1 operands share the input dtype (bf16 fast path if the caller already
    # holds bf16); everything downstream accumulates / activates in f32.
    w1c = w1.astype(x.dtype)

    # Tile selection: single full-extent tile for small B (no padding, no
    # masking); otherwise balanced tiles, each a multiple of 128 so the
    # (1, tile_b) output block is lane-dense and unmasked. The tail tile's
    # OOB input rows read garbage, but those output lanes are write-masked
    # and sliced off below.
    block_batch = _round_up(max(block_batch, 128), 128)
    if B <= block_batch and min_tiles <= 1:
        tile_b = B
        num_tiles = 1
    else:
        num_tiles = max(min_tiles, pl.cdiv(B, block_batch))
        tile_b = _round_up(pl.cdiv(B, num_tiles), 128)
        num_tiles = pl.cdiv(B, tile_b)

    # Weights/biases: whole-array blocks with constant index maps -> stay
    # resident in VMEM across the batch grid (total < 20 KiB).
    def resident(a):
        return pl.BlockSpec(a.shape, lambda i, _nd=a.ndim: (0,) * _nd)

    out = pl.pallas_call(
        mlp_kernel,
        out_shape=jax.ShapeDtypeStruct((1, B), jnp.float32),
        grid=(num_tiles,),
        in_specs=[
            pl.BlockSpec((tile_b, F), lambda i: (i, 0)),       # x: streamed batch tiles
            resident(w1c), resident(b1),
            resident(w2), resident(b2),
            resident(w3), resident(b3),
        ],
        out_specs=pl.BlockSpec((1, tile_b), lambda i: (0, i)),  # lane-dense output rows
        compiler_params=pltpu.CompilerParams(
            dimension_semantics=("parallel",),                  # v7x: both TCs
            vmem_limit_bytes=vmem_limit_bytes),
    )(x, w1c, b1, w2, b2, w3, b3)

    # Back to the PyTorch (B, 1) shape.
    return out[0, :, None]


def init_params(key, input_size):
    """Deterministic init mimicking nn.Linear (uniform(-1/sqrt(fan_in), +1/sqrt(fan_in))).

    Weights kept in PyTorch [out, in] layout; biases stored as columns;
    fc3's weight stored as a (32, 1) column for the in-kernel reduction.
    """
    def linear(key, fan_in, fan_out):
        kw, kb = jax.random.split(key)
        bound = 1.0 / jnp.sqrt(jnp.float32(fan_in))
        w = jax.random.uniform(kw, (fan_out, fan_in), jnp.float32, -bound, bound)
        b = jax.random.uniform(kb, (fan_out, 1), jnp.float32, -bound, bound)
        return w, b

    k1, k2, k3 = jax.random.split(key, 3)
    w1, b1 = linear(k1, input_size, 64)
    w2, b2 = linear(k2, 64, 32)
    w3, b3 = linear(k3, 32, 1)
    return (w1, b1, w2, b2, w3.T, b3)   # w3 stored as (32, 1)


def reference_forward(x, params):
    """Pure-JAX reference of the PyTorch forward for correctness checks."""
    w1, b1, w2, b2, w3_col, b3 = params
    h1 = jax.nn.relu(x @ w1.T + b1[:, 0])
    h2 = jax.nn.relu(h1 @ w2.T + b2[:, 0])
    return jax.nn.sigmoid(h2 @ w3_col + b3[:, 0])


if __name__ == "__main__":
    key = jax.random.PRNGKey(0)
    kx, kp = jax.random.split(key)

    input_size = 32
    params = init_params(kp, input_size)

    # Small case: single full-extent tile, no padding, no masking.
    x_small = jax.random.normal(kx, (8, input_size), dtype=jnp.float32)
    out_small = jax.block_until_ready(intrusion_detection_forward(x_small, params))
    ref_small = reference_forward(x_small, params)
    assert out_small.shape == (8, 1)
    assert jnp.allclose(out_small, ref_small, atol=1e-5, rtol=1e-5)

    # Multi-tile case: exercises the batch grid, balanced 128-multiple tiles,
    # the masked OOB tail (300 rows over 3x128-row tiles), resident weights,
    # lane-dense output rows and the "parallel" batch axis.
    x_big = jax.random.normal(kx, (300, input_size), dtype=jnp.float32)
    out_big = jax.block_until_ready(
        intrusion_detection_forward(x_big, params, block_batch=128))
    ref_big = reference_forward(x_big, params)
    assert out_big.shape == (300, 1)
    assert jnp.allclose(out_big, ref_big, atol=1e-5, rtol=1e-5)
    assert jnp.all(jnp.isfinite(out_big))

    # bf16 fast path: the caller already holds bf16 activations (no wrapper
    # astype over x); f32 accumulation keeps the error small.
    x_bf16 = jax.random.normal(kx, (300, input_size), dtype=jnp.bfloat16)
    out_bf16 = jax.block_until_ready(
        intrusion_detection_forward(x_bf16, params, block_batch=256, min_tiles=2))
    ref_bf16 = reference_forward(x_bf16.astype(jnp.float32), params)
    assert out_bf16.shape == (300, 1)
    assert jnp.allclose(out_bf16, ref_bf16, atol=2e-2)

    print("KERNEL_OK")
</pallas_src>

<mosaic_0001>
module attributes {stable_mosaic.version = 11 : i64} {
  func.func @mlp_kernel(%arg0: i32, %arg1: memref<8x32xf32, #tpu.memory_space<vmem>>, %arg2: memref<64x32xf32, #tpu.memory_space<vmem>>, %arg3: memref<64x1xf32, #tpu.memory_space<vmem>>, %arg4: memref<32x64xf32, #tpu.memory_space<vmem>>, %arg5: memref<32x1xf32, #tpu.memory_space<vmem>>, %arg6: memref<32x1xf32, #tpu.memory_space<vmem>>, %arg7: memref<1x1xf32, #tpu.memory_space<vmem>>, %arg8: memref<1x8xf32, #tpu.memory_space<vmem>>) attributes {dimension_semantics = [#tpu.dimension_semantics<parallel>], iteration_bounds = array<i64: 1>, scalar_prefetch = 0 : i64, scratch_operands = 0 : i64, tpu.core_type = #tpu.core_type<tc>, window_params = [{transform_indices = @transform_0, window_bounds = array<i64: 8, 32>}, {pipeline_mode = #tpu.pipeline_mode<synchronous>, transform_indices = @transform_1, window_bounds = array<i64: 64, 32>}, {pipeline_mode = #tpu.pipeline_mode<synchronous>, transform_indices = @transform_2, window_bounds = array<i64: 64, 1>}, {pipeline_mode = #tpu.pipeline_mode<synchronous>, transform_indices = @transform_3, window_bounds = array<i64: 32, 64>}, {pipeline_mode = #tpu.pipeline_mode<synchronous>, transform_indices = @transform_4, window_bounds = array<i64: 32, 1>}, {pipeline_mode = #tpu.pipeline_mode<synchronous>, transform_indices = @transform_5, window_bounds = array<i64: 32, 1>}, {pipeline_mode = #tpu.pipeline_mode<synchronous>, transform_indices = @transform_6, window_bounds = array<i64: 1, 1>}, {transform_indices = @transform_7, window_bounds = array<i64: 1, 8>}]} {
    %c0 = arith.constant 0 : index
    %c0_0 = arith.constant 0 : index
    %0 = vector.load %arg1[%c0, %c0_0] : memref<8x32xf32, #tpu.memory_space<vmem>>, vector<8x32xf32>
    %c0_1 = arith.constant 0 : index
    %c0_2 = arith.constant 0 : index
    %1 = vector.load %arg2[%c0_1, %c0_2] : memref<64x32xf32, #tpu.memory_space<vmem>>, vector<64x32xf32>
    %cst = arith.constant dense<0.000000e+00> : vector<64x8xf32>
    %2 = tpu.matmul %1, %0, %cst {dimension_numbers = #tpu.dot_dimension_numbers<[1], [1], [0], [0], [0, 0, 1, 0], [], []>} : vector<64x32xf32>, vector<8x32xf32>, vector<64x8xf32> -> vector<64x8xf32>
    %c0_3 = arith.constant 0 : index
    %c0_4 = arith.constant 0 : index
    %3 = vector.load %arg3[%c0_3, %c0_4] : memref<64x1xf32, #tpu.memory_space<vmem>>, vector<64x1xf32>
    %4 = vector.broadcast %3 : vector<64x1xf32> to vector<64x8xf32>
    %5 = arith.addf %2, %4 : vector<64x8xf32>
    %cst_5 = arith.constant 0.000000e+00 : f32
    %6 = vector.broadcast %cst_5 : f32 to vector<64x8xf32>
    %7 = arith.maximumf %5, %6 : vector<64x8xf32>
    %c0_6 = arith.constant 0 : index
    %c0_7 = arith.constant 0 : index
    %8 = vector.load %arg4[%c0_6, %c0_7] : memref<32x64xf32, #tpu.memory_space<vmem>>, vector<32x64xf32>
    %cst_8 = arith.constant dense<0.000000e+00> : vector<32x8xf32>
    %9 = tpu.matmul %8, %7, %cst_8 {dimension_numbers = #tpu.dot_dimension_numbers<[1], [0], [0], [1], [0, 0, 1, 1], [], []>} : vector<32x64xf32>, vector<64x8xf32>, vector<32x8xf32> -> vector<32x8xf32>
    %c0_9 = arith.constant 0 : index
    %c0_10 = arith.constant 0 : index
    %10 = vector.load %arg5[%c0_9, %c0_10] : memref<32x1xf32, #tpu.memory_space<vmem>>, vector<32x1xf32>
    %11 = vector.broadcast %10 : vector<32x1xf32> to vector<32x8xf32>
    %12 = arith.addf %9, %11 : vector<32x8xf32>
    %cst_11 = arith.constant 0.000000e+00 : f32
    %13 = vector.broadcast %cst_11 : f32 to vector<32x8xf32>
    %14 = arith.maximumf %12, %13 : vector<32x8xf32>
    %c0_12 = arith.constant 0 : index
    %c0_13 = arith.constant 0 : index
    %15 = vector.load %arg6[%c0_12, %c0_13] : memref<32x1xf32, #tpu.memory_space<vmem>>, vector<32x1xf32>
    %16 = vector.broadcast %15 : vector<32x1xf32> to vector<32x8xf32>
    %17 = arith.mulf %14, %16 : vector<32x8xf32>
    %cst_14 = arith.constant dense<0.000000e+00> : vector<8xf32>
    %18 = vector.multi_reduction <add>, %17, %cst_14 [0] : vector<32x8xf32> to vector<8xf32>
    %19 = vector.shape_cast %18 : vector<8xf32> to vector<1x8xf32>
    %c0_15 = arith.constant 0 : index
    %c0_16 = arith.constant 0 : index
    %20 = vector.load %arg7[%c0_15, %c0_16] : memref<1x1xf32, #tpu.memory_space<vmem>>, vector<1x1xf32>
    %21 = vector.broadcast %20 : vector<1x1xf32> to vector<1x8xf32>
    %22 = arith.addf %19, %21 : vector<1x8xf32>
    %23 = arith.negf %22 : vector<1x8xf32>
    %24 = math.exp %23 : vector<1x8xf32>
    %cst_17 = arith.constant 1.000000e+00 : f32
    %25 = vector.broadcast %cst_17 : f32 to vector<1x8xf32>
    %26 = arith.addf %25, %24 : vector<1x8xf32>
    %27 = arith.divf %25, %26 : vector<1x8xf32>
    %c0_18 = arith.constant 0 : index
    %c0_19 = arith.constant 0 : index
    %28 = vector.load %arg8[%c0_18, %c0_19] : memref<1x8xf32, #tpu.memory_space<vmem>>, vector<1x8xf32>
    tpu.vector_store %arg8[%c0_18, %c0_19], %27 {strides = array<i32>} : memref<1x8xf32, #tpu.memory_space<vmem>>, vector<1x8xf32>,
    return
  }
  func.func @transform_0(%arg0: i32) -> (i32, i32) {
    %c0_i32 = arith.constant 0 : i32
    %c0_i32_0 = arith.constant 0 : i32
    return %arg0, %c0_i32 : i32, i32
  }
  func.func @transform_1(%arg0: i32) -> (i32, i32) {
    %c0_i32 = arith.constant 0 : i32
    %c0_i32_0 = arith.constant 0 : i32
    %c0_i32_1 = arith.constant 0 : i32
    return %c0_i32, %c0_i32_0 : i32, i32
  }
  func.func @transform_2(%arg0: i32) -> (i32, i32) {
    %c0_i32 = arith.constant 0 : i32
    %c0_i32_0 = arith.constant 0 : i32
    %c0_i32_1 = arith.constant 0 : i32
    return %c0_i32, %c0_i32_0 : i32, i32
  }
  func.func @transform_3(%arg0: i32) -> (i32, i32) {
    %c0_i32 = arith.constant 0 : i32
    %c0_i32_0 = arith.constant 0 : i32
    %c0_i32_1 = arith.constant 0 : i32
    return %c0_i32, %c0_i32_0 : i32, i32
  }
  func.func @transform_4(%arg0: i32) -> (i32, i32) {
    %c0_i32 = arith.constant 0 : i32
    %c0_i32_0 = arith.constant 0 : i32
    %c0_i32_1 = arith.constant 0 : i32
    return %c0_i32, %c0_i32_0 : i32, i32
  }
  func.func @transform_5(%arg0: i32) -> (i32, i32) {
    %c0_i32 = arith.constant 0 : i32
    %c0_i32_0 = arith.constant 0 : i32
    %c0_i32_1 = arith.constant 0 : i32
    return %c0_i32, %c0_i32_0 : i32, i32
  }
  func.func @transform_6(%arg0: i32) -> (i32, i32) {
    %c0_i32 = arith.constant 0 : i32
    %c0_i32_0 = arith.constant 0 : i32
    %c0_i32_1 = arith.constant 0 : i32
    return %c0_i32, %c0_i32_0 : i32, i32
  }
  func.func @transform_7(%arg0: i32) -> (i32, i32) {
    %c0_i32 = arith.constant 0 : i32
    %c0_i32_0 = arith.constant 0 : i32
    return %c0_i32, %arg0 : i32, i32
  }
}

</mosaic_0001>

<llo_original>
// kernel: tpu_custom_call.1
$region0: #{tpu_custom_call.1}
  #allocation0 [shape = 'u32[]', space=smem, size = 0x4, offset = 0x4, fixed_abs, tag = 'smem constant byte address 0x4 - core index']
  #allocation1 [shape = 'u32[144,128]{1,0:T(1,128)}', space=vmem, size = 0x12000, scoped, tag = 'internal scratch']
  #allocation2 [shape = 'f32[1,1]{1,0:T(1,128)S(1)}', space=vmem, size = 0x200, scoped, tag = 'scoped memory for tpu_custom_call.1']
  %s0 = inlined_call_operand.vmem [shape: f32[8,32], index: 0, kind: input, shape index: {}]
  %s1 = inlined_call_operand.vmem [shape: f32[64,32], index: 1, kind: input, shape index: {}]
  %s2 = inlined_call_operand.vmem [shape: f32[64,1], index: 2, kind: input, shape index: {}]
  %s3 = inlined_call_operand.vmem [shape: f32[32,64], index: 3, kind: input, shape index: {}]
  %s4 = inlined_call_operand.vmem [shape: f32[32,1], index: 4, kind: input, shape index: {}]
  %s5 = inlined_call_operand.vmem [shape: f32[32,1], index: 5, kind: input, shape index: {}]
  %s6 = inlined_call_operand.<no memory space> [shape: f32[1,1], index: 6, kind: input, shape index: {}]
  %s7 = inlined_call_operand.hbm [shape: f32[1,8], index: 7, kind: output, shape index: {}]
  %s8 = sld [smem:[#allocation0]]
  $region38: #{tpu_custom_call.1} parent=0
    _
  %s10 = ssub.s32 1, %s8
  %s11 = scalar_select 0, %s10, %s8
  %v12 = vstv %s6
  %13 = vst [vmem:[#allocation2] sm:$0x1] %v12
  $region1: #{tpu_custom_call.1} parent=0
    #allocation3 [shape = 'u8[512]{0}', space=vmem, size = 0x400, scoped, tag = 'output window, operand 0, single buffered']
    #allocation4 [shape = 's32[1]{0}', space=sflag, size = 0x4, scoped, tag = 'scoped memory for tpu_custom_call.1']
    %14 = vsyncpa [#allocation4], 0
    // Predicated region
    $region2: #{tpu_custom_call.1} parent=1 // pred_check
      _
    $region3: #{tpu_custom_call.1} parent=1 // pred_check_branch
      %16 = sbr.rel (0) target = $region5
    $region4: #{tpu_custom_call.1} parent=1 // pred_region
      _
    $region5: #{tpu_custom_call.1} parent=1 // pred_fallthru
      _
    // Predicated region
    $region6: #{tpu_custom_call.1} parent=1 // pred_check
      _
    $region7: #{tpu_custom_call.1} parent=1 // pred_check_branch
      %18 = sbr.rel (0) target = $region9
    $region8: #{tpu_custom_call.1} parent=1 // pred_region
      _
    $region9: #{tpu_custom_call.1} parent=1 // pred_fallthru
      _
    // Predicated region
    $region10: #{tpu_custom_call.1} parent=1 // pred_check
      _
    $region11: #{tpu_custom_call.1} parent=1 // pred_check_branch
      %20 = sbr.rel (0) target = $region13
    $region12: #{tpu_custom_call.1} parent=1 // pred_region
      _
    $region13: #{tpu_custom_call.1} parent=1 // pred_fallthru
      _
    // Predicated region
    $region14: #{tpu_custom_call.1} parent=1 // pred_check
      _
    $region15: #{tpu_custom_call.1} parent=1 // pred_check_branch
      %22 = sbr.rel (0) target = $region17
    $region16: #{tpu_custom_call.1} parent=1 // pred_region
      _
    $region17: #{tpu_custom_call.1} parent=1 // pred_fallthru
      _
    // Predicated region
    $region18: #{tpu_custom_call.1} parent=1 // pred_check
      _
    $region19: #{tpu_custom_call.1} parent=1 // pred_check_branch
      %24 = sbr.rel (0) target = $region21
    $region20: #{tpu_custom_call.1} parent=1 // pred_region
      _
    $region21: #{tpu_custom_call.1} parent=1 // pred_fallthru
      _
    // Predicated region
    $region22: #{tpu_custom_call.1} parent=1 // pred_check
      _
    $region23: #{tpu_custom_call.1} parent=1 // pred_check_branch
      %26 = sbr.rel (0) target = $region25
    $region24: #{tpu_custom_call.1} parent=1 // pred_region
      _
    $region25: #{tpu_custom_call.1} parent=1 // pred_fallthru
      _
    // Predicated region
    $region26: #{tpu_custom_call.1} parent=1 // pred_check
      _
    $region27: #{tpu_custom_call.1} parent=1 // pred_check_branch
      %28 = sbr.rel (0) target = $region29
    $region28: #{tpu_custom_call.1} parent=1 // pred_region
      _
    $region29: #{tpu_custom_call.1} parent=1 // pred_fallthru
      _
    %v29 = vld [vmem:[%s0] sm:$0xff]
    %v30 = vld [vmem:[%s1] sm:$0xff]
    %v31 = vld [vmem:[%s1 + $0x8] sm:$0xff]
    %v32 = vld [vmem:[%s1 + $0x10] sm:$0xff]
    %v33 = vld [vmem:[%s1 + $0x18] sm:$0xff]
    %v34 = vld [vmem:[%s1 + $0x20] sm:$0xff]
    %v35 = vld [vmem:[%s1 + $0x28] sm:$0xff]
    %v36 = vld [vmem:[%s1 + $0x30] sm:$0xff]
    %v37 = vld [vmem:[%s1 + $0x38] sm:$0xff]
    %v38 = vld [vmem:[%s2] sm:$0xff]
    %v39 = vld [vmem:[%s2 + $0x8] sm:$0xff]
    %v40 = vld [vmem:[%s2 + $0x10] sm:$0xff]
    %v41 = vld [vmem:[%s2 + $0x18] sm:$0xff]
    %v42 = vld [vmem:[%s2 + $0x20] sm:$0xff]
    %v43 = vld [vmem:[%s2 + $0x28] sm:$0xff]
    %v44 = vld [vmem:[%s2 + $0x30] sm:$0xff]
    %v45 = vld [vmem:[%s2 + $0x38] sm:$0xff]
    %47 = vset.pattern.permute.xlu0 0
    %48 = vperm.xlu0 %47, %v38
    %v49 = vpop.permute.xlu0 %48
    %52 = vset.pattern.permute.xlu0 0
    %53 = vperm.xlu0 %52, %v39
    %v54 = vpop.permute.xlu0 %53
    %57 = vset.pattern.permute.xlu0 0
    %58 = vperm.xlu0 %57, %v40
    %v59 = vpop.permute.xlu0 %58
    %62 = vset.pattern.permute.xlu0 0
    %63 = vperm.xlu0 %62, %v41
    %v64 = vpop.permute.xlu0 %63
    %67 = vset.pattern.permute.xlu0 0
    %68 = vperm.xlu0 %67, %v42
    %v69 = vpop.permute.xlu0 %68
    %72 = vset.pattern.permute.xlu0 0
    %73 = vperm.xlu0 %72, %v43
    %v74 = vpop.permute.xlu0 %73
    %77 = vset.pattern.permute.xlu0 0
    %78 = vperm.xlu0 %77, %v44
    %v79 = vpop.permute.xlu0 %78
    %82 = vset.pattern.permute.xlu0 0
    %83 = vperm.xlu0 %82, %v45
    %v84 = vpop.permute.xlu0 %83
    %vm86 = vcmask 261120
    %v88 = vsel %vm86, %v30, 0
    %v91 = vsel %vm86, %v31, 0
    %v94 = vsel %vm86, %v32, 0
    %v97 = vsel %vm86, %v33, 0
    %v100 = vsel %vm86, %v34, 0
    %v103 = vsel %vm86, %v35, 0
    %v106 = vsel %vm86, %v36, 0
    %v109 = vsel %vm86, %v37, 0
    %v112 = vsel %vm86, %v29, 0
    %114 = vmatprep.subr.mxu0 0.0
    %115 = vmatpush1.xpose.msra.mxu0 0.0
    %116 = vmatprep.subr.mxu0 0.0
    %117 = vmatpush1.xpose.msra.mxu0 0.0
    %118 = vmatprep.subr.mxu0 0.0
    %119 = vmatpush1.xpose.msra.mxu0 0.0
    %120 = vmatprep.subr.mxu0 0.0
    %121 = vmatpush1.xpose.msra.mxu0 0.0
    %122 = vmatprep.subr.mxu0 0.0
    %123 = vmatpush1.xpose.msra.mxu0 0.0
    %124 = vmatprep.subr.mxu0 0.0
    %125 = vmatpush1.xpose.msra.mxu0 0.0
    %126 = vmatprep.subr.mxu0 0.0
    %127 = vmatpush1.xpose.msra.mxu0 0.0
    %128 = vmatprep.subr.mxu0 0.0
    %129 = vmatpush1.xpose.msra.mxu0 0.0
    %130 = vmatprep.subr.mxu0 0.0
    %131 = vmatpush1.xpose.msra.mxu0 0.0
    %132 = vmatprep.subr.mxu0 0.0
    %133 = vmatpush1.xpose.msra.mxu0 0.0
    %134 = vmatprep.subr.mxu0 0.0
    %135 = vmatpush1.xpose.msra.mxu0 0.0
    %136 = vmatprep.subr.mxu0 0.0
    %137 = vmatpush1.xpose.msra.mxu0 0.0
    %138 = vmatprep.subr.mxu0 0.0
    %139 = vmatpush1.xpose.msra.mxu0 0.0
    %140 = vmatprep.subr.mxu0 0.0
    %141 = vmatpush1.xpose.msra.mxu0 0.0
    %142 = vmatprep.subr.mxu0 0.0
    %143 = vmatpush1.xpose.msra.mxu0 0.0
    %144 = vmatprep.subr.mxu0 0.0
    %145 = vmatpush1.xpose.msra.mxu0 %v112
    %146 = vmatprep.subr.mxu0 0.0
    %147 = vmatpush2.xpose.msra.mxu0 0.0
    %148 = vmatprep.subr.mxu0 0.0
    %149 = vmatpush2.xpose.msra.mxu0 0.0
    %150 = vmatprep.subr.mxu0 0.0
    %151 = vmatpush2.xpose.msra.mxu0 0.0
    %152 = vmatprep.subr.mxu0 0.0
    %153 = vmatpush2.xpose.msra.mxu0 0.0
    %154 = vmatprep.subr.mxu0 0.0
    %155 = vmatpush2.xpose.msra.mxu0 0.0
    %156 = vmatprep.subr.mxu0 0.0
    %157 = vmatpush2.xpose.msra.mxu0 0.0
    %158 = vmatprep.subr.mxu0 0.0
    %159 = vmatpush2.xpose.msra.mxu0 0.0
    %160 = vmatprep.subr.mxu0 0.0
    %161 = vmatpush2.xpose.msra.mxu0 0.0
    %162 = vmatprep.subr.mxu0 0.0
    %163 = vmatpush2.xpose.msra.mxu0 0.0
    %164 = vmatprep.subr.mxu0 0.0
    %165 = vmatpush2.xpose.msra.mxu0 0.0
    %166 = vmatprep.subr.mxu0 0.0
    %167 = vmatpush2.xpose.msra.mxu0 0.0
    %168 = vmatprep.subr.mxu0 0.0
    %169 = vmatpush2.xpose.msra.mxu0 0.0
    %170 = vmatprep.subr.mxu0 0.0
    %171 = vmatpush2.xpose.msra.mxu0 0.0
    %172 = vmatprep.subr.mxu0 0.0
    %173 = vmatpush2.xpose.msra.mxu0 0.0
    %174 = vmatprep.subr.mxu0 0.0
    %175 = vmatpush2.xpose.msra.mxu0 0.0
    %176 = vmatprep.subr.mxu0 0.0
    %177 = vmatpush2.xpose.msra.mxu0 0.0
    %178 = vmatprep.mubr.f32.mxu0 0.0
    %179 = vmatmul.mubr.f32.gmra.mxu0 %v88
    %v180 = vpop.f32.mrf.mxu0
    %v181 = vadd.f32 %v49, %v180
    %v182 = vpop.f32.mrf.mxu0
    %183 = vmatprep.mubr.f32.mxu0 0.0
    %184 = vmatmul.mubr.f32.gmra.mxu0 %v91
    %v185 = vpop.f32.mrf.mxu0
    %v186 = vadd.f32 %v54, %v185
    %v187 = vpop.f32.mrf.mxu0
    %188 = vmatprep.mubr.f32.mxu0 0.0
    %189 = vmatmul.mubr.f32.gmra.mxu0 %v94
    %v190 = vpop.f32.mrf.mxu0
    %v191 = vadd.f32 %v59, %v190
    %v192 = vpop.f32.mrf.mxu0
    %193 = vmatprep.mubr.f32.mxu0 0.0
    %194 = vmatmul.mubr.f32.gmra.mxu0 %v97
    %v195 = vpop.f32.mrf.mxu0
    %v196 = vadd.f32 %v64, %v195
    %v197 = vpop.f32.mrf.mxu0
    %198 = vmatprep.mubr.f32.mxu0 0.0
    %199 = vmatmul.mubr.f32.gmra.mxu0 %v100
    %v200 = vpop.f32.mrf.mxu0
    %v201 = vadd.f32 %v69, %v200
    %v202 = vpop.f32.mrf.mxu0
    %203 = vmatprep.mubr.f32.mxu0 0.0
    %204 = vmatmul.mubr.f32.gmra.mxu0 %v103
    %v205 = vpop.f32.mrf.mxu0
    %v206 = vadd.f32 %v74, %v205
    %v207 = vpop.f32.mrf.mxu0
    %208 = vmatprep.mubr.f32.mxu0 0.0
    %209 = vmatmul.mubr.f32.gmra.mxu0 %v106
    %v210 = vpop.f32.mrf.mxu0
    %v211 = vadd.f32 %v79, %v210
    %v212 = vpop.f32.mrf.mxu0
    %213 = vmatprep.mubr.f32.mxu0 0.0
    %214 = vmatmul.mubr.f32.gmra.mxu0 %v109
    %v215 = vpop.f32.mrf.mxu0
    %v216 = vadd.f32 %v84, %v215
    %v217 = vpop.f32.mrf.mxu0
    %218 = vdwg.mxu0
    %v219 = vmax.f32 %v181, 0.0
    %v220 = vmax.f32 %v186, 0.0
    %v221 = vmax.f32 %v191, 0.0
    %v222 = vmax.f32 %v196, 0.0
    %v223 = vmax.f32 %v201, 0.0
    %v224 = vmax.f32 %v206, 0.0
    %v225 = vmax.f32 %v211, 0.0
    %v226 = vmax.f32 %v216, 0.0
    %v227 = vld [vmem:[%s3] sm:$0xff]
    %v228 = vld [vmem:[%s3 + $0x8] sm:$0xff]
    %v229 = vld [vmem:[%s3 + $0x10] sm:$0xff]
    %v230 = vld [vmem:[%s3 + $0x18] sm:$0xff]
    %v231 = vld [vmem:[%s4] sm:$0xff]
    %v232 = vld [vmem:[%s4 + $0x8] sm:$0xff]
    %v233 = vld [vmem:[%s4 + $0x10] sm:$0xff]
    %v234 = vld [vmem:[%s4 + $0x18] sm:$0xff]
    %236 = vset.pattern.permute.xlu0 0
    %237 = vperm.xlu0 %236, %v231
    %v238 = vpop.permute.xlu0 %237
    %241 = vset.pattern.permute.xlu0 0
    %242 = vperm.xlu0 %241, %v232
    %v243 = vpop.permute.xlu0 %242
    %246 = vset.pattern.permute.xlu0 0
    %247 = vperm.xlu0 %246, %v233
    %v248 = vpop.permute.xlu0 %247
    %251 = vset.pattern.permute.xlu0 0
    %252 = vperm.xlu0 %251, %v234
    %v253 = vpop.permute.xlu0 %252
    %vm255 = vcmask 523264
    %v257 = vsel %vm255, %v227, 0
    %v260 = vsel %vm255, %v228, 0
    %v263 = vsel %vm255, %v229, 0
    %v266 = vsel %vm255, %v230, 0
    %268 = vmatprep.subr.mxu0 0.0
    %269 = vmatpush1.msra.mxu0 0.0
    %270 = vmatprep.subr.mxu0 0.0
    %271 = vmatpush1.msra.mxu0 0.0
    %272 = vmatprep.subr.mxu0 0.0
    %273 = vmatpush1.msra.mxu0 0.0
    %274 = vmatprep.subr.mxu0 0.0
    %275 = vmatpush1.msra.mxu0 0.0
    %276 = vmatprep.subr.mxu0 0.0
    %277 = vmatpush1.msra.mxu0 0.0
    %278 = vmatprep.subr.mxu0 0.0
    %279 = vmatpush1.msra.mxu0 0.0
    %280 = vmatprep.subr.mxu0 0.0
    %281 = vmatpush1.msra.mxu0 0.0
    %282 = vmatprep.subr.mxu0 0.0
    %283 = vmatpush1.msra.mxu0 0.0
    %284 = vmatprep.subr.mxu0 0.0
    %285 = vmatpush1.msra.mxu0 %v226
    %286 = vmatprep.subr.mxu0 0.0
    %287 = vmatpush1.msra.mxu0 %v225
    %288 = vmatprep.subr.mxu0 0.0
    %289 = vmatpush1.msra.mxu0 %v224
    %290 = vmatprep.subr.mxu0 0.0
    %291 = vmatpush1.msra.mxu0 %v223
    %292 = vmatprep.subr.mxu0 0.0
    %293 = vmatpush1.msra.mxu0 %v222
    %294 = vmatprep.subr.mxu0 0.0
    %295 = vmatpush1.msra.mxu0 %v221
    %296 = vmatprep.subr.mxu0 0.0
    %297 = vmatpush1.msra.mxu0 %v220
    %298 = vmatprep.subr.mxu0 0.0
    %299 = vmatpush1.msra.mxu0 %v219
    %300 = vmatprep.subr.mxu0 0.0
    %301 = vmatpush2.msra.mxu0 0.0
    %302 = vmatprep.subr.mxu0 0.0
    %303 = vmatpush2.msra.mxu0 0.0
    %304 = vmatprep.subr.mxu0 0.0
    %305 = vmatpush2.msra.mxu0 0.0
    %306 = vmatprep.subr.mxu0 0.0
    %307 = vmatpush2.msra.mxu0 0.0
    %308 = vmatprep.subr.mxu0 0.0
    %309 = vmatpush2.msra.mxu0 0.0
    %310 = vmatprep.subr.mxu0 0.0
    %311 = vmatpush2.msra.mxu0 0.0
    %312 = vmatprep.subr.mxu0 0.0
    %313 = vmatpush2.msra.mxu0 0.0
    %314 = vmatprep.subr.mxu0 0.0
    %315 = vmatpush2.msra.mxu0 0.0
    %316 = vmatprep.subr.mxu0 0.0
    %317 = vmatpush2.msra.mxu0 0.0
    %318 = vmatprep.subr.mxu0 0.0
    %319 = vmatpush2.msra.mxu0 0.0
    %320 = vmatprep.subr.mxu0 0.0
    %321 = vmatpush2.msra.mxu0 0.0
    %322 = vmatprep.subr.mxu0 0.0
    %323 = vmatpush2.msra.mxu0 0.0
    %324 = vmatprep.subr.mxu0 0.0
    %325 = vmatpush2.msra.mxu0 0.0
    %326 = vmatprep.subr.mxu0 0.0
    %327 = vmatpush2.msra.mxu0 0.0
    %328 = vmatprep.subr.mxu0 0.0
    %329 = vmatpush2.msra.mxu0 0.0
    %330 = vmatprep.subr.mxu0 0.0
    %331 = vmatpush2.msra.mxu0 0.0
    %332 = vmatprep.mubr.f32.mxu0 0.0
    %333 = vmatmul.mubr.f32.gmra.mxu0 %v257
    %v334 = vpop.f32.mrf.mxu0
    %v335 = vadd.f32 %v238, %v334
    %v336 = vpop.f32.mrf.mxu0
    %337 = vmatprep.mubr.f32.mxu0 0.0
    %338 = vmatmul.mubr.f32.gmra.mxu0 %v260
    %v339 = vpop.f32.mrf.mxu0
    %v340 = vadd.f32 %v243, %v339
    %v341 = vpop.f32.mrf.mxu0
    %342 = vmatprep.mubr.f32.mxu0 0.0
    %343 = vmatmul.mubr.f32.gmra.mxu0 %v263
    %v344 = vpop.f32.mrf.mxu0
    %v345 = vadd.f32 %v248, %v344
    %v346 = vpop.f32.mrf.mxu0
    %347 = vmatprep.mubr.f32.mxu0 0.0
    %348 = vmatmul.mubr.f32.gmra.mxu0 %v266
    %v349 = vpop.f32.mrf.mxu0
    %v350 = vadd.f32 %v253, %v349
    %v351 = vpop.f32.mrf.mxu0
    %352 = vdwg.mxu0
    %v353 = vmax.f32 %v335, 0.0
    %v354 = vmax.f32 %v340, 0.0
    %v355 = vmax.f32 %v345, 0.0
    %v356 = vmax.f32 %v350, 0.0
    %v357 = vld [vmem:[%s5] sm:$0xff]
    %v358 = vld [vmem:[%s5 + $0x8] sm:$0xff]
    %v359 = vld [vmem:[%s5 + $0x10] sm:$0xff]
    %v360 = vld [vmem:[%s5 + $0x18] sm:$0xff]
    %362 = vset.pattern.permute.xlu0 0
    %363 = vperm.xlu0 %362, %v357
    %v364 = vpop.permute.xlu0 %363
    %367 = vset.pattern.permute.xlu0 0
    %368 = vperm.xlu0 %367, %v358
    %v369 = vpop.permute.xlu0 %368
    %372 = vset.pattern.permute.xlu0 0
    %373 = vperm.xlu0 %372, %v359
    %v374 = vpop.permute.xlu0 %373
    %377 = vset.pattern.permute.xlu0 0
    %378 = vperm.xlu0 %377, %v360
    %v379 = vpop.permute.xlu0 %378
    %v381 = vmul.f32 %v353, %v364
    %v382 = vmul.f32 %v354, %v369
    %v383 = vmul.f32 %v355, %v374
    %v384 = vmul.f32 %v356, %v379
    %vm385 = vcmask 64512
    %v386 = vsel %vm385, %v381, 0.0
    %v387 = vsel %vm385, %v382, 0.0
    %v388 = vadd.f32 %v386, %v387
    %v389 = vsel %vm385, %v383, 0.0
    %v390 = vadd.f32 %v388, %v389
    %v391 = vsel %vm385, %v384, 0.0
    %v392 = vadd.f32 %v390, %v391
    %v393 = vrot.slane %v392, 4
    %v394 = vadd.f32 %v392, %v393
    %v395 = vrot.slane %v394, 2
    %v396 = vadd.f32 %v394, %v395
    %v397 = vrot.slane %v396, 1
    %v398 = vadd.f32 %v396, %v397
    %v399 = vld [vmem:[#allocation2] sm:$0x1]
    %401 = vset.pattern.permute.xlu0 0
    %402 = vperm.xlu0 %401, %v399
    %v403 = vpop.permute.xlu0 %402
    %v405 = vlaneseq
    %v406 = vshrl.u32 %v405, 7
    %v407 = vsub.s32 0, %v406
    %v408 = vrot.slane %v403, %v407
    %v409 = vadd.f32 %v398, %v408
    %v410 = vxor.u32 %v409, 2147483648
    %v411 = vmul.f32 %v410, 1.442695
    %v412 = vpow.pop %v411
    %v413 = vadd.f32 %v412, 1.0
    %v414 = vrcp.pop %v413
    %v415 = vmul.f32 1.0, %v414
    %vm416 = vcmask 57344
    %417 = vst.msk [vmem:[#allocation3] sm:$0x1] %vm416, %v415
    // Predicated region
    $region30: #{tpu_custom_call.1} parent=1 // pred_check
      _
    $region31: #{tpu_custom_call.1} parent=1 // pred_check_branch
      %419 = sbr.rel (0) target = $region33
    $region32: #{tpu_custom_call.1} parent=1 // pred_region
      %s421 = ssub.s32 16, 16
      %422 = vsyncadd [#allocation4], %s421
      %s424 = sshll.u32 [#allocation3], 4
      %s425 = int_to_ptr.vmem [resolvable:$true] %s424
      %427 = dma.vmem_to_hbm [thread:$0]  %s425, 16, %s7, [#allocation4]
    $region33: #{tpu_custom_call.1} parent=1 // pred_fallthru
      _
    // Predicated region
    $region34: #{tpu_custom_call.1} parent=1 // pred_check
      _
    $region35: #{tpu_custom_call.1} parent=1 // pred_check_branch
      %429 = sbr.rel (0) target = $region37
    $region36: #{tpu_custom_call.1} parent=1 // pred_region
      %430 = dma.done [#allocation4], 16
    $region37: #{tpu_custom_call.1} parent=1 // pred_fallthru
      _
    %431 = vsyncpa [#allocation4], 1

</llo_original>
